<compile_context>
chip_gen: v5e
topology: v5e:2x2
jax: 0.10.0
libtpu: 0.0.40
codegen_flags: <defaults>
</compile_context>

<pallas_src>
import functools

import jax
import jax.numpy as jnp
from jax import lax
from jax.experimental import pallas as pl
from jax.experimental.pallas import tpu as pltpu


MXU_DTYPE = jnp.bfloat16   # operand dtype for the hoisted input projection
TIME_CHUNK = 8             # recurrence unroll / projection chunk (review: 4-8)


def _round_up(n, m):
    return (n + m - 1) // m * m


def _pad_to(a, shape):
    return jnp.pad(a, [(0, s - d) for d, s in zip(a.shape, shape)])


def rnn_classifier_kernel(x_ref, wih_ref, whh_ref, b_ref, wfc_ref, bfc_ref,
                          out_ref, *, seq_len, batch, t_chunk, n_chunks,
                          hidden_pad):
    """Single invocation (grid=()).

    Software-pipelined over time chunks: each outer iteration (a) issues the
    bf16 batched input projection for chunk c+1 (time-parallel MXU work) and
    (b) runs the t_chunk serial recurrence steps for chunk c, so the
    projection overlaps the latency-bound recurrence instead of being
    serialized in front of it.
    """

    def project(c):
        # (t_chunk*Bp, Ip) bf16  x  (Ip, Hp) bf16  ->  f32 accumulation,
        # pre-summed bias (b_ih + b_hh) added once.
        return (jnp.dot(x_ref[c], wih_ref[...],
                        preferred_element_type=jnp.float32) + b_ref[...])

    # Hoist W_hh into vregs only while it fits comfortably (<=16 vregs at
    # H_pad=128); larger hidden sizes re-read from VMEM each step (no spills).
    whh_hoisted = whh_ref[...] if hidden_pad <= 128 else None

    h0 = jnp.zeros((batch, hidden_pad), jnp.float32)
    xw0 = project(0)

    def chunk_body(c, carry):
        h, xw_cur = carry

        # Projection for the NEXT chunk (index clamped on the last iteration
        # so the body stays branch-free; the redundant result is unused).
        xw_next = project(jnp.minimum(c + 1, n_chunks - 1))

        whh = whh_hoisted if whh_hoisted is not None else whh_ref[...]
        # TODO(synk): keep W_hh resident in the MXU across these steps with
        # pltpu.matmul_push_rhs / matmul_acc_lhs / matmul_pop instead of
        # re-pushing the full weight tile per step for only `batch` LHS rows.
        for tl in range(t_chunk):                     # static partial unroll
            xw_t = xw_cur[tl * batch:(tl + 1) * batch]        # (Bp, Hp) static
            h_new = jnp.tanh(
                xw_t + jnp.dot(h, whh, preferred_element_type=jnp.float32))
            # Timesteps beyond seq_len (T padded up to a chunk multiple) are
            # no-ops on the hidden state.
            h = jnp.where(c * t_chunk + tl < seq_len, h_new, h)
        return h, xw_next

    h_last, _ = lax.fori_loop(0, n_chunks, chunk_body, (h0, xw0))

    # Classifier head on the final hidden state; lane-dense (Bp, Op) store.
    out_ref[...] = (
        jnp.dot(h_last, wfc_ref[...], preferred_element_type=jnp.float32)
        + bfc_ref[...]
    ).astype(out_ref.dtype)


def rnn_classifier_forward(x, params, *, t_chunk=TIME_CHUNK,
                           mxu_dtype=MXU_DTYPE):
    """x: (B, T, I) float32 (PyTorch batch_first convention). Returns (B, O)."""
    w_ih, w_hh, b_ih, b_hh, w_fc, b_fc = params
    B, T, I = x.shape
    H = w_ih.shape[0]
    O = w_fc.shape[0]

    # Pad to vreg/MXU tiles: batch -> 8 sublanes, feature dims -> 128 lanes.
    B_pad = _round_up(B, 8)
    I_pad = _round_up(I, 128)
    H_pad = _round_up(H, 128)
    O_pad = _round_up(O, 128)
    n_chunks = (T + t_chunk - 1) // t_chunk
    T_pad = n_chunks * t_chunk

    # One layout pass over x (transpose+pad+cast fuse into a single XLA copy):
    # time-major keeps every per-step xw slice a full aligned (8,128) tile on
    # the serial critical path, which beats strided batch-major reads there.
    x_tm = jnp.transpose(x, (1, 0, 2))                        # (T, B, I)
    x_tm = _pad_to(x_tm, (T_pad, B_pad, I_pad)).astype(mxu_dtype)
    x_chunks = x_tm.reshape(n_chunks, t_chunk * B_pad, I_pad)

    # Pre-transpose weights, pre-sum the two RNN biases, zero-pad everything so
    # padded hidden/output lanes stay exactly zero.
    wih_t = _pad_to(w_ih.T, (I_pad, H_pad)).astype(mxu_dtype)
    whh_t = _pad_to(w_hh.T, (H_pad, H_pad)).astype(jnp.float32)
    b_sum = _pad_to((b_ih + b_hh).reshape(1, H), (1, H_pad)).astype(jnp.float32)
    wfc_t = _pad_to(w_fc.T, (H_pad, O_pad)).astype(jnp.float32)
    bfc = _pad_to(b_fc.reshape(1, O), (1, O_pad)).astype(jnp.float32)

    kernel = functools.partial(
        rnn_classifier_kernel, seq_len=T, batch=B_pad, t_chunk=t_chunk,
        n_chunks=n_chunks, hidden_pad=H_pad)

    # Scoped-VMEM budget sized to the actual resident buffers (defaults:
    # 16 MiB on v5e, 32 MiB on v6e/v7x), with headroom and a hard cap.
    resident = (x_chunks.size * x_chunks.dtype.itemsize
                + wih_t.size * wih_t.dtype.itemsize
                + (whh_t.size + wfc_t.size + b_sum.size + bfc.size) * 4
                + B_pad * O_pad * 4
                + 2 * t_chunk * B_pad * H_pad * 4)       # double-buffered xw
    vmem_limit = int(min(max(2 * resident + (2 << 20), 16 << 20), 100 << 20))

    out_pad = pl.pallas_call(
        kernel,
        out_shape=jax.ShapeDtypeStruct((B_pad, O_pad), jnp.float32),
        in_specs=[pl.BlockSpec(memory_space=pltpu.MemorySpace.VMEM)] * 6,
        out_specs=pl.BlockSpec(memory_space=pltpu.MemorySpace.VMEM),
        compiler_params=pltpu.CompilerParams(vmem_limit_bytes=vmem_limit),
    )(x_chunks, wih_t, whh_t, b_sum, wfc_t, bfc)

    # TODO(synk): for very long sequences on v7x (64 MiB VMEM), stream x_chunks
    # from HBM via memory_space=pl.ANY + double-buffered pltpu.make_async_copy,
    # and split B_pad across the two TensorCores with a "parallel" grid axis.
    return out_pad[:B, :O]


def reference_forward(x, params, mxu_dtype=jnp.float32):
    """Pure-JAX reference for nn.RNN(batch_first=True) + Linear.  `mxu_dtype`
    mirrors the kernel's input-projection operand dtype (bf16 on the MXU)."""
    w_ih, w_hh, b_ih, b_hh, w_fc, b_fc = params
    B = x.shape[0]
    H = w_ih.shape[0]
    xq = x.astype(mxu_dtype).astype(jnp.float32)
    wihq = w_ih.astype(mxu_dtype).astype(jnp.float32)
    h0 = jnp.zeros((B, H), jnp.float32)

    def step(h, x_t):
        h_new = jnp.tanh(x_t @ wihq.T + b_ih + h @ w_hh.T + b_hh)
        return h_new, None

    h_last, _ = lax.scan(step, h0, jnp.transpose(xq, (1, 0, 2)))
    return h_last @ w_fc.T + b_fc


def init_params(key, input_size, hidden_size, output_size):
    """Deterministic init mimicking PyTorch's U(-1/sqrt(H), 1/sqrt(H))."""
    ks = jax.random.split(key, 6)
    bound = 1.0 / jnp.sqrt(hidden_size)
    w_ih = jax.random.uniform(ks[0], (hidden_size, input_size), jnp.float32,
                              -bound, bound)
    w_hh = jax.random.uniform(ks[1], (hidden_size, hidden_size), jnp.float32,
                              -bound, bound)
    b_ih = jax.random.uniform(ks[2], (hidden_size,), jnp.float32, -bound, bound)
    b_hh = jax.random.uniform(ks[3], (hidden_size,), jnp.float32, -bound, bound)
    w_fc = jax.random.uniform(ks[4], (output_size, hidden_size), jnp.float32,
                              -bound, bound)
    b_fc = jax.random.uniform(ks[5], (output_size,), jnp.float32, -bound, bound)
    return (w_ih, w_hh, b_ih, b_hh, w_fc, b_fc)


if __name__ == "__main__":
    B, T, INPUT, HIDDEN, OUTPUT = 2, 8, 16, 32, 4

    key = jax.random.PRNGKey(0)
    k_x, k_p = jax.random.split(key)
    x = jax.random.normal(k_x, (B, T, INPUT), jnp.float32)
    params = init_params(k_p, INPUT, HIDDEN, OUTPUT)

    out = jax.block_until_ready(rnn_classifier_forward(x, params))
    assert out.shape == (B, OUTPUT)

    # Tight check vs. a reference that mirrors the kernel's bf16 MXU operands
    # in the input projection (everything else f32).
    ref_mirror = reference_forward(x, params, mxu_dtype=MXU_DTYPE)
    assert jnp.allclose(out, ref_mirror, atol=1e-4, rtol=1e-4), (out, ref_mirror)

    # Loose sanity check vs. the exact f32 semantics of the PyTorch module
    # (only the hoisted input projection uses bf16 MXU inputs).
    ref_exact = reference_forward(x, params)
    assert jnp.allclose(out, ref_exact, atol=1e-1, rtol=1e-1), (out, ref_exact)

    print("KERNEL_OK")
</pallas_src>

<mosaic_0001>
module attributes {stable_mosaic.version = 11 : i64} {
  func.func @rnn_classifier_kernel(%arg0: memref<1x64x128xbf16, #tpu.memory_space<vmem>>, %arg1: memref<128x128xbf16, #tpu.memory_space<vmem>>, %arg2: memref<128x128xf32, #tpu.memory_space<vmem>>, %arg3: memref<1x128xf32, #tpu.memory_space<vmem>>, %arg4: memref<128x128xf32, #tpu.memory_space<vmem>>, %arg5: memref<1x128xf32, #tpu.memory_space<vmem>>, %arg6: memref<8x128xf32, #tpu.memory_space<vmem>>) attributes {dimension_semantics = [], scalar_prefetch = 0 : i64, scratch_operands = 0 : i64, tpu.core_type = #tpu.core_type<tc>} {
    %c0 = arith.constant 0 : index
    %c0_0 = arith.constant 0 : index
    %0 = vector.load %arg2[%c0, %c0_0] : memref<128x128xf32, #tpu.memory_space<vmem>>, vector<128x128xf32>
    %cst = arith.constant 0.000000e+00 : f32
    %1 = vector.broadcast %cst : f32 to vector<8x128xf32>
    %c0_1 = arith.constant 0 : index
    %c0_2 = arith.constant 0 : index
    %c0_3 = arith.constant 0 : index
    %2 = vector.load %arg0[%c0_1, %c0_2, %c0_3] : memref<1x64x128xbf16, #tpu.memory_space<vmem>>, vector<1x64x128xbf16>
    %3 = vector.shape_cast %2 : vector<1x64x128xbf16> to vector<64x128xbf16>
    %c0_4 = arith.constant 0 : index
    %c0_5 = arith.constant 0 : index
    %4 = vector.load %arg1[%c0_4, %c0_5] : memref<128x128xbf16, #tpu.memory_space<vmem>>, vector<128x128xbf16>
    %cst_6 = arith.constant dense<0.000000e+00> : vector<64x128xf32>
    %5 = tpu.matmul %3, %4, %cst_6 {dimension_numbers = #tpu.dot_dimension_numbers<[1], [0], [0], [1], [0, 0, 1, 1], [], []>} : vector<64x128xbf16>, vector<128x128xbf16>, vector<64x128xf32> -> vector<64x128xf32>
    %c0_7 = arith.constant 0 : index
    %c0_8 = arith.constant 0 : index
    %6 = vector.load %arg3[%c0_7, %c0_8] : memref<1x128xf32, #tpu.memory_space<vmem>>, vector<1x128xf32>
    %7 = vector.broadcast %6 : vector<1x128xf32> to vector<64x128xf32>
    %8 = arith.addf %5, %7 : vector<64x128xf32>
    %c0_i32 = arith.constant 0 : i32
    %c1_i32 = arith.constant 1 : i32
    %9 = arith.addi %c0_i32, %c1_i32 : i32
    %c0_i32_9 = arith.constant 0 : i32
    %10 = arith.minsi %9, %c0_i32_9 : i32
    %11 = arith.index_cast %10 : i32 to index
    %c0_10 = arith.constant 0 : index
    %c0_11 = arith.constant 0 : index
    %12 = vector.load %arg0[%11, %c0_10, %c0_11] : memref<1x64x128xbf16, #tpu.memory_space<vmem>>, vector<1x64x128xbf16>
    %13 = vector.shape_cast %12 : vector<1x64x128xbf16> to vector<64x128xbf16>
    %c0_12 = arith.constant 0 : index
    %c0_13 = arith.constant 0 : index
    %14 = vector.load %arg1[%c0_12, %c0_13] : memref<128x128xbf16, #tpu.memory_space<vmem>>, vector<128x128xbf16>
    %cst_14 = arith.constant dense<0.000000e+00> : vector<64x128xf32>
    %15 = tpu.matmul %13, %14, %cst_14 {dimension_numbers = #tpu.dot_dimension_numbers<[1], [0], [0], [1], [0, 0, 1, 1], [], []>} : vector<64x128xbf16>, vector<128x128xbf16>, vector<64x128xf32> -> vector<64x128xf32>
    %c0_15 = arith.constant 0 : index
    %c0_16 = arith.constant 0 : index
    %16 = vector.load %arg3[%c0_15, %c0_16] : memref<1x128xf32, #tpu.memory_space<vmem>>, vector<1x128xf32>
    %17 = vector.broadcast %16 : vector<1x128xf32> to vector<64x128xf32>
    %18 = arith.addf %15, %17 : vector<64x128xf32>
    %19 = vector.extract_strided_slice %8 {offsets = [0, 0], sizes = [8, 128], strides = [1, 1]} : vector<64x128xf32> to vector<8x128xf32>
    %cst_17 = arith.constant dense<0.000000e+00> : vector<8x128xf32>
    %20 = tpu.matmul %1, %0, %cst_17 {dimension_numbers = #tpu.dot_dimension_numbers<[1], [0], [0], [1], [0, 0, 1, 1], [], []>} : vector<8x128xf32>, vector<128x128xf32>, vector<8x128xf32> -> vector<8x128xf32>
    %21 = arith.addf %19, %20 : vector<8x128xf32>
    %22 = math.tanh %21 : vector<8x128xf32>
    %c8_i32 = arith.constant 8 : i32
    %23 = arith.muli %c0_i32, %c8_i32 : i32
    %c0_i32_18 = arith.constant 0 : i32
    %24 = arith.addi %23, %c0_i32_18 : i32
    %c8_i32_19 = arith.constant 8 : i32
    %25 = arith.cmpi slt, %24, %c8_i32_19 : i32
    %26 = arith.select %25, %22, %1 : vector<8x128xf32>
    %27 = vector.extract_strided_slice %8 {offsets = [8, 0], sizes = [8, 128], strides = [1, 1]} : vector<64x128xf32> to vector<8x128xf32>
    %cst_20 = arith.constant dense<0.000000e+00> : vector<8x128xf32>
    %28 = tpu.matmul %26, %0, %cst_20 {dimension_numbers = #tpu.dot_dimension_numbers<[1], [0], [0], [1], [0, 0, 1, 1], [], []>} : vector<8x128xf32>, vector<128x128xf32>, vector<8x128xf32> -> vector<8x128xf32>
    %29 = arith.addf %27, %28 : vector<8x128xf32>
    %30 = math.tanh %29 : vector<8x128xf32>
    %c8_i32_21 = arith.constant 8 : i32
    %31 = arith.muli %c0_i32, %c8_i32_21 : i32
    %c1_i32_22 = arith.constant 1 : i32
    %32 = arith.addi %31, %c1_i32_22 : i32
    %c8_i32_23 = arith.constant 8 : i32
    %33 = arith.cmpi slt, %32, %c8_i32_23 : i32
    %34 = arith.select %33, %30, %26 : vector<8x128xf32>
    %35 = vector.extract_strided_slice %8 {offsets = [16, 0], sizes = [8, 128], strides = [1, 1]} : vector<64x128xf32> to vector<8x128xf32>
    %cst_24 = arith.constant dense<0.000000e+00> : vector<8x128xf32>
    %36 = tpu.matmul %34, %0, %cst_24 {dimension_numbers = #tpu.dot_dimension_numbers<[1], [0], [0], [1], [0, 0, 1, 1], [], []>} : vector<8x128xf32>, vector<128x128xf32>, vector<8x128xf32> -> vector<8x128xf32>
    %37 = arith.addf %35, %36 : vector<8x128xf32>
    %38 = math.tanh %37 : vector<8x128xf32>
    %c8_i32_25 = arith.constant 8 : i32
    %39 = arith.muli %c0_i32, %c8_i32_25 : i32
    %c2_i32 = arith.constant 2 : i32
    %40 = arith.addi %39, %c2_i32 : i32
    %c8_i32_26 = arith.constant 8 : i32
    %41 = arith.cmpi slt, %40, %c8_i32_26 : i32
    %42 = arith.select %41, %38, %34 : vector<8x128xf32>
    %43 = vector.extract_strided_slice %8 {offsets = [24, 0], sizes = [8, 128], strides = [1, 1]} : vector<64x128xf32> to vector<8x128xf32>
    %cst_27 = arith.constant dense<0.000000e+00> : vector<8x128xf32>
    %44 = tpu.matmul %42, %0, %cst_27 {dimension_numbers = #tpu.dot_dimension_numbers<[1], [0], [0], [1], [0, 0, 1, 1], [], []>} : vector<8x128xf32>, vector<128x128xf32>, vector<8x128xf32> -> vector<8x128xf32>
    %45 = arith.addf %43, %44 : vector<8x128xf32>
    %46 = math.tanh %45 : vector<8x128xf32>
    %c8_i32_28 = arith.constant 8 : i32
    %47 = arith.muli %c0_i32, %c8_i32_28 : i32
    %c3_i32 = arith.constant 3 : i32
    %48 = arith.addi %47, %c3_i32 : i32
    %c8_i32_29 = arith.constant 8 : i32
    %49 = arith.cmpi slt, %48, %c8_i32_29 : i32
    %50 = arith.select %49, %46, %42 : vector<8x128xf32>
    %51 = vector.extract_strided_slice %8 {offsets = [32, 0], sizes = [8, 128], strides = [1, 1]} : vector<64x128xf32> to vector<8x128xf32>
    %cst_30 = arith.constant dense<0.000000e+00> : vector<8x128xf32>
    %52 = tpu.matmul %50, %0, %cst_30 {dimension_numbers = #tpu.dot_dimension_numbers<[1], [0], [0], [1], [0, 0, 1, 1], [], []>} : vector<8x128xf32>, vector<128x128xf32>, vector<8x128xf32> -> vector<8x128xf32>
    %53 = arith.addf %51, %52 : vector<8x128xf32>
    %54 = math.tanh %53 : vector<8x128xf32>
    %c8_i32_31 = arith.constant 8 : i32
    %55 = arith.muli %c0_i32, %c8_i32_31 : i32
    %c4_i32 = arith.constant 4 : i32
    %56 = arith.addi %55, %c4_i32 : i32
    %c8_i32_32 = arith.constant 8 : i32
    %57 = arith.cmpi slt, %56, %c8_i32_32 : i32
    %58 = arith.select %57, %54, %50 : vector<8x128xf32>
    %59 = vector.extract_strided_slice %8 {offsets = [40, 0], sizes = [8, 128], strides = [1, 1]} : vector<64x128xf32> to vector<8x128xf32>
    %cst_33 = arith.constant dense<0.000000e+00> : vector<8x128xf32>
    %60 = tpu.matmul %58, %0, %cst_33 {dimension_numbers = #tpu.dot_dimension_numbers<[1], [0], [0], [1], [0, 0, 1, 1], [], []>} : vector<8x128xf32>, vector<128x128xf32>, vector<8x128xf32> -> vector<8x128xf32>
    %61 = arith.addf %59, %60 : vector<8x128xf32>
    %62 = math.tanh %61 : vector<8x128xf32>
    %c8_i32_34 = arith.constant 8 : i32
    %63 = arith.muli %c0_i32, %c8_i32_34 : i32
    %c5_i32 = arith.constant 5 : i32
    %64 = arith.addi %63, %c5_i32 : i32
    %c8_i32_35 = arith.constant 8 : i32
    %65 = arith.cmpi slt, %64, %c8_i32_35 : i32
    %66 = arith.select %65, %62, %58 : vector<8x128xf32>
    %67 = vector.extract_strided_slice %8 {offsets = [48, 0], sizes = [8, 128], strides = [1, 1]} : vector<64x128xf32> to vector<8x128xf32>
    %cst_36 = arith.constant dense<0.000000e+00> : vector<8x128xf32>
    %68 = tpu.matmul %66, %0, %cst_36 {dimension_numbers = #tpu.dot_dimension_numbers<[1], [0], [0], [1], [0, 0, 1, 1], [], []>} : vector<8x128xf32>, vector<128x128xf32>, vector<8x128xf32> -> vector<8x128xf32>
    %69 = arith.addf %67, %68 : vector<8x128xf32>
    %70 = math.tanh %69 : vector<8x128xf32>
    %c8_i32_37 = arith.constant 8 : i32
    %71 = arith.muli %c0_i32, %c8_i32_37 : i32
    %c6_i32 = arith.constant 6 : i32
    %72 = arith.addi %71, %c6_i32 : i32
    %c8_i32_38 = arith.constant 8 : i32
    %73 = arith.cmpi slt, %72, %c8_i32_38 : i32
    %74 = arith.select %73, %70, %66 : vector<8x128xf32>
    %75 = vector.extract_strided_slice %8 {offsets = [56, 0], sizes = [8, 128], strides = [1, 1]} : vector<64x128xf32> to vector<8x128xf32>
    %cst_39 = arith.constant dense<0.000000e+00> : vector<8x128xf32>
    %76 = tpu.matmul %74, %0, %cst_39 {dimension_numbers = #tpu.dot_dimension_numbers<[1], [0], [0], [1], [0, 0, 1, 1], [], []>} : vector<8x128xf32>, vector<128x128xf32>, vector<8x128xf32> -> vector<8x128xf32>
    %77 = arith.addf %75, %76 : vector<8x128xf32>
    %78 = math.tanh %77 : vector<8x128xf32>
    %c8_i32_40 = arith.constant 8 : i32
    %79 = arith.muli %c0_i32, %c8_i32_40 : i32
    %c7_i32 = arith.constant 7 : i32
    %80 = arith.addi %79, %c7_i32 : i32
    %c8_i32_41 = arith.constant 8 : i32
    %81 = arith.cmpi slt, %80, %c8_i32_41 : i32
    %82 = arith.select %81, %78, %74 : vector<8x128xf32>
    %c1_i32_42 = arith.constant 1 : i32
    %c0_43 = arith.constant 0 : index
    %c0_44 = arith.constant 0 : index
    %83 = vector.load %arg4[%c0_43, %c0_44] : memref<128x128xf32, #tpu.memory_space<vmem>>, vector<128x128xf32>
    %cst_45 = arith.constant dense<0.000000e+00> : vector<8x128xf32>
    %84 = tpu.matmul %82, %83, %cst_45 {dimension_numbers = #tpu.dot_dimension_numbers<[1], [0], [0], [1], [0, 0, 1, 1], [], []>} : vector<8x128xf32>, vector<128x128xf32>, vector<8x128xf32> -> vector<8x128xf32>
    %c0_46 = arith.constant 0 : index
    %c0_47 = arith.constant 0 : index
    %85 = vector.load %arg5[%c0_46, %c0_47] : memref<1x128xf32, #tpu.memory_space<vmem>>, vector<1x128xf32>
    %86 = vector.broadcast %85 : vector<1x128xf32> to vector<8x128xf32>
    %87 = arith.addf %84, %86 : vector<8x128xf32>
    %c0_48 = arith.constant 0 : index
    %c0_49 = arith.constant 0 : index
    %88 = vector.load %arg6[%c0_48, %c0_49] : memref<8x128xf32, #tpu.memory_space<vmem>>, vector<8x128xf32>
    tpu.vector_store %arg6[%c0_48, %c0_49], %87 {strides = array<i32>} : memref<8x128xf32, #tpu.memory_space<vmem>>, vector<8x128xf32>,
    return
  }
}

</mosaic_0001>

<llo_original>
// kernel: tpu_custom_call.1
$region0: #{tpu_custom_call.1}
  #allocation0 [shape = 'u32[]', space=smem, size = 0x4, offset = 0x4, fixed_abs, tag = 'smem constant byte address 0x4 - core index']
  #allocation1 [shape = 'u32[72,128]{1,0:T(1,128)}', space=vmem, size = 0x9000, scoped, tag = 'internal scratch']
  %s0 = inlined_call_operand.hbm [shape: bf16[1,64,128], index: 0, kind: input, shape index: {}]
  %s1 = inlined_call_operand.hbm [shape: bf16[128,128], index: 1, kind: input, shape index: {}]
  %s2 = inlined_call_operand.hbm [shape: f32[128,128], index: 2, kind: input, shape index: {}]
  %s3 = inlined_call_operand.vmem [shape: f32[1,128], index: 3, kind: input, shape index: {}]
  %s4 = inlined_call_operand.hbm [shape: f32[128,128], index: 4, kind: input, shape index: {}]
  %s5 = inlined_call_operand.vmem [shape: f32[1,128], index: 5, kind: input, shape index: {}]
  %s6 = inlined_call_operand.hbm [shape: f32[8,128], index: 6, kind: output, shape index: {}]
  %s7 = sld [smem:[#allocation0]]
  $region50: #{tpu_custom_call.1} parent=0
    _
  %s9 = ssub.s32 1, %s7
  %s10 = scalar_select 0, %s9, %s7
  $region1: #{tpu_custom_call.1} parent=0
    #allocation2 [shape = 'u8[16384]{0}', space=vmem, size = 0x4000, scoped, tag = 'input window, operand 0, single buffered']
    #allocation3 [shape = 's32[1]{0}', space=sflag, size = 0x4, scoped, tag = 'scoped memory for tpu_custom_call.1']
    #allocation4 [shape = 's32[1]{0}', space=sflag, size = 0x4, scoped, tag = 'scoped memory for tpu_custom_call.1']
    #allocation5 [shape = 'u8[32768]{0}', space=vmem, size = 0x8000, scoped, tag = 'input window, operand 1, single buffered']
    #allocation6 [shape = 's32[1]{0}', space=sflag, size = 0x4, scoped, tag = 'scoped memory for tpu_custom_call.1']
    #allocation7 [shape = 'u8[65536]{0}', space=vmem, size = 0x10000, scoped, tag = 'input window, operand 2, single buffered']
    #allocation8 [shape = 'u8[65536]{0}', space=vmem, size = 0x10000, scoped, tag = 'input window, operand 4, single buffered']
    #allocation9 [shape = 's32[1]{0}', space=sflag, size = 0x4, scoped, tag = 'scoped memory for tpu_custom_call.1']
    #allocation10 [shape = 'u8[4096]{0}', space=vmem, size = 0x1000, scoped, tag = 'output window, operand 0, single buffered']
    %11 = vsyncpa [#allocation3], 0
    %12 = vsyncpa [#allocation6], 0
    %13 = vsyncpa [#allocation9], 0
    %14 = vsyncpa [#allocation4], 0
    // Predicated region
    $region2: #{tpu_custom_call.1} parent=1 // pred_check
      _
    $region3: #{tpu_custom_call.1} parent=1 // pred_check_branch
      %16 = sbr.rel (0) target = $region5
    $region4: #{tpu_custom_call.1} parent=1 // pred_region
      %18 = vsyncadd [#allocation3], 0
      %s19 = sshll.u32 %s0, 4
      %s20 = int_to_ptr.hbm [resolvable:$true] %s19
      %s21 = sshll.u32 [#allocation2], 4
      %s22 = int_to_ptr.vmem [resolvable:$true] %s21
      %27 = dma.hbm_to_vmem [thread:$0]  %s20, 512, %s22, [#allocation3], 64, 64, 4
    $region5: #{tpu_custom_call.1} parent=1 // pred_fallthru
      _
    // Predicated region
    $region6: #{tpu_custom_call.1} parent=1 // pred_check
      _
    $region7: #{tpu_custom_call.1} parent=1 // pred_check_branch
      %29 = sbr.rel (0) target = $region9
    $region8: #{tpu_custom_call.1} parent=1 // pred_region
      %31 = vsyncadd [#allocation6], 0
      %s32 = sshll.u32 %s1, 4
      %s33 = int_to_ptr.hbm [resolvable:$true] %s32
      %s34 = sshll.u32 [#allocation5], 4
      %s35 = int_to_ptr.vmem [resolvable:$true] %s34
      %40 = dma.hbm_to_vmem [thread:$0]  %s33, 1024, %s35, [#allocation6], 64, 64, 4
    $region9: #{tpu_custom_call.1} parent=1 // pred_fallthru
      _
    // Predicated region
    $region10: #{tpu_custom_call.1} parent=1 // pred_check
      _
    $region11: #{tpu_custom_call.1} parent=1 // pred_check_branch
      %42 = sbr.rel (0) target = $region13
    $region12: #{tpu_custom_call.1} parent=1 // pred_region
      %44 = vsyncadd [#allocation6], 0
      %s45 = sshll.u32 %s2, 4
      %s46 = int_to_ptr.hbm [resolvable:$true] %s45
      %s47 = sshll.u32 [#allocation7], 4
      %s48 = int_to_ptr.vmem [resolvable:$true] %s47
      %53 = dma.hbm_to_vmem [thread:$0]  %s46, 2048, %s48, [#allocation6], 128, 128, 8
    $region13: #{tpu_custom_call.1} parent=1 // pred_fallthru
      _
    // Predicated region
    $region14: #{tpu_custom_call.1} parent=1 // pred_check
      _
    $region15: #{tpu_custom_call.1} parent=1 // pred_check_branch
      %55 = sbr.rel (0) target = $region17
    $region16: #{tpu_custom_call.1} parent=1 // pred_region
      _
    $region17: #{tpu_custom_call.1} parent=1 // pred_fallthru
      _
    // Predicated region
    $region18: #{tpu_custom_call.1} parent=1 // pred_check
      _
    $region19: #{tpu_custom_call.1} parent=1 // pred_check_branch
      %57 = sbr.rel (0) target = $region21
    $region20: #{tpu_custom_call.1} parent=1 // pred_region
      %59 = vsyncadd [#allocation9], 0
      %s60 = sshll.u32 %s4, 4
      %s61 = int_to_ptr.hbm [resolvable:$true] %s60
      %s62 = sshll.u32 [#allocation8], 4
      %s63 = int_to_ptr.vmem [resolvable:$true] %s62
      %68 = dma.hbm_to_vmem [thread:$0]  %s61, 2048, %s63, [#allocation9], 128, 128, 8
    $region21: #{tpu_custom_call.1} parent=1 // pred_fallthru
      _
    // Predicated region
    $region22: #{tpu_custom_call.1} parent=1 // pred_check
      _
    $region23: #{tpu_custom_call.1} parent=1 // pred_check_branch
      %70 = sbr.rel (0) target = $region25
    $region24: #{tpu_custom_call.1} parent=1 // pred_region
      _
    $region25: #{tpu_custom_call.1} parent=1 // pred_fallthru
      _
    // Predicated region
    $region26: #{tpu_custom_call.1} parent=1 // pred_check
      _
    $region27: #{tpu_custom_call.1} parent=1 // pred_check_branch
      %72 = sbr.rel (0) target = $region29
    $region28: #{tpu_custom_call.1} parent=1 // pred_region
      %74 = dma.done [#allocation3], 512
    $region29: #{tpu_custom_call.1} parent=1 // pred_fallthru
      _
    // Predicated region
    $region30: #{tpu_custom_call.1} parent=1 // pred_check
      _
    $region31: #{tpu_custom_call.1} parent=1 // pred_check_branch
      %76 = sbr.rel (0) target = $region33
    $region32: #{tpu_custom_call.1} parent=1 // pred_region
      %78 = dma.done [#allocation6], 1024
    $region33: #{tpu_custom_call.1} parent=1 // pred_fallthru
      _
    // Predicated region
    $region34: #{tpu_custom_call.1} parent=1 // pred_check
      _
    $region35: #{tpu_custom_call.1} parent=1 // pred_check_branch
      %80 = sbr.rel (0) target = $region37
    $region36: #{tpu_custom_call.1} parent=1 // pred_region
      %82 = dma.done [#allocation6], 2048
    $region37: #{tpu_custom_call.1} parent=1 // pred_fallthru
      _
    // Predicated region
    $region38: #{tpu_custom_call.1} parent=1 // pred_check
      _
    $region39: #{tpu_custom_call.1} parent=1 // pred_check_branch
      %84 = sbr.rel (0) target = $region41
    $region40: #{tpu_custom_call.1} parent=1 // pred_region
      %86 = dma.done [#allocation9], 2048
    $region41: #{tpu_custom_call.1} parent=1 // pred_fallthru
      _
    %v87 = vld [vmem:[#allocation7] sm:$0xff]
    %v88 = vld [vmem:[#allocation7 + $0x8] sm:$0xff]
    %v89 = vld [vmem:[#allocation7 + $0x10] sm:$0xff]
    %v90 = vld [vmem:[#allocation7 + $0x18] sm:$0xff]
    %v91 = vld [vmem:[#allocation7 + $0x20] sm:$0xff]
    %v92 = vld [vmem:[#allocation7 + $0x28] sm:$0xff]
    %v93 = vld [vmem:[#allocation7 + $0x30] sm:$0xff]
    %v94 = vld [vmem:[#allocation7 + $0x38] sm:$0xff]
    %v95 = vld [vmem:[#allocation7 + $0x40] sm:$0xff]
    %v96 = vld [vmem:[#allocation7 + $0x48] sm:$0xff]
    %v97 = vld [vmem:[#allocation7 + $0x50] sm:$0xff]
    %v98 = vld [vmem:[#allocation7 + $0x58] sm:$0xff]
    %v99 = vld [vmem:[#allocation7 + $0x60] sm:$0xff]
    %v100 = vld [vmem:[#allocation7 + $0x68] sm:$0xff]
    %v101 = vld [vmem:[#allocation7 + $0x70] sm:$0xff]
    %v102 = vld [vmem:[#allocation7 + $0x78] sm:$0xff]
    %v103 = vld [vmem:[#allocation2] sm:$0xf]
    %v104 = vld [vmem:[#allocation2 + $0x4] sm:$0xf]
    %v105 = vld [vmem:[#allocation2 + $0x8] sm:$0xf]
    %v106 = vld [vmem:[#allocation2 + $0xc] sm:$0xf]
    %v107 = vld [vmem:[#allocation2 + $0x10] sm:$0xf]
    %v108 = vld [vmem:[#allocation2 + $0x14] sm:$0xf]
    %v109 = vld [vmem:[#allocation2 + $0x18] sm:$0xf]
    %v110 = vld [vmem:[#allocation2 + $0x1c] sm:$0xf]
    %v111 = vld [vmem:[#allocation5] sm:$0xf]
    %v112 = vld [vmem:[#allocation5 + $0x4] sm:$0xf]
    %v113 = vld [vmem:[#allocation5 + $0x8] sm:$0xf]
    %v114 = vld [vmem:[#allocation5 + $0xc] sm:$0xf]
    %v115 = vld [vmem:[#allocation5 + $0x10] sm:$0xf]
    %v116 = vld [vmem:[#allocation5 + $0x14] sm:$0xf]
    %v117 = vld [vmem:[#allocation5 + $0x18] sm:$0xf]
    %v118 = vld [vmem:[#allocation5 + $0x1c] sm:$0xf]
    %v119 = vld [vmem:[#allocation5 + $0x20] sm:$0xf]
    %v120 = vld [vmem:[#allocation5 + $0x24] sm:$0xf]
    %v121 = vld [vmem:[#allocation5 + $0x28] sm:$0xf]
    %v122 = vld [vmem:[#allocation5 + $0x2c] sm:$0xf]
    %v123 = vld [vmem:[#allocation5 + $0x30] sm:$0xf]
    %v124 = vld [vmem:[#allocation5 + $0x34] sm:$0xf]
    %v125 = vld [vmem:[#allocation5 + $0x38] sm:$0xf]
    %v126 = vld [vmem:[#allocation5 + $0x3c] sm:$0xf]
    %v127 = vld [vmem:[%s3] sm:$0x1]
    %v129 = vperm.slane %v127, 0
    %v139 = vunpack.c.l.b16 %v103
    %v140 = vunpack.c.l.b16 %v104
    %v141 = vunpack.c.l.b16 %v105
    %v142 = vunpack.c.l.b16 %v106
    %v143 = vunpack.c.l.b16 %v107
    %v144 = vunpack.c.l.b16 %v108
    %v145 = vunpack.c.l.b16 %v109
    %v146 = vunpack.c.l.b16 %v110
    %v147 = vpack.c.b16 %v140, %v139
    %v148 = vpack.c.b16 %v142, %v141
    %v149 = vpack.c.b16 %v144, %v143
    %v150 = vpack.c.b16 %v146, %v145
    %v171 = vunpack.c.l.b16 %v111
    %v172 = vunpack.c.l.b16 %v112
    %v173 = vunpack.c.l.b16 %v113
    %v174 = vunpack.c.l.b16 %v114
    %v175 = vunpack.c.l.b16 %v115
    %v176 = vunpack.c.l.b16 %v116
    %v177 = vunpack.c.l.b16 %v117
    %v178 = vunpack.c.l.b16 %v118
    %v179 = vunpack.c.l.b16 %v119
    %v180 = vunpack.c.l.b16 %v120
    %v181 = vunpack.c.l.b16 %v121
    %v182 = vunpack.c.l.b16 %v122
    %v183 = vunpack.c.l.b16 %v123
    %v184 = vunpack.c.l.b16 %v124
    %v185 = vunpack.c.l.b16 %v125
    %v186 = vunpack.c.l.b16 %v126
    %v187 = vpack.c.b16 %v172, %v171
    %v188 = vpack.c.b16 %v174, %v173
    %v189 = vpack.c.b16 %v176, %v175
    %v190 = vpack.c.b16 %v178, %v177
    %v191 = vpack.c.b16 %v180, %v179
    %v192 = vpack.c.b16 %v182, %v181
    %v193 = vpack.c.b16 %v184, %v183
    %v194 = vpack.c.b16 %v186, %v185
    %203 = vmatpush.bf16.msra.mxu0 %v194
    %204 = vmatpush.bf16.msra.mxu0 %v193
    %205 = vmatpush.bf16.msra.mxu0 %v192
    %206 = vmatpush.bf16.msra.mxu0 %v191
    %207 = vmatpush.bf16.msra.mxu0 %v190
    %208 = vmatpush.bf16.msra.mxu0 %v189
    %209 = vmatpush.bf16.msra.mxu0 %v188
    %210 = vmatpush.bf16.msra.mxu0 %v187
    %211 = vmatmul.bf16.gmra.mxu0 %v147
    %v212 = vpop.f32.mrf.mxu0
    %v213 = vadd.f32 %v129, %v212
    %v214 = vpop.f32.mrf.mxu0
    %v215 = vadd.f32 %v129, %v214
    %216 = vmatmul.bf16.gmra.mxu0 %v148
    %v217 = vpop.f32.mrf.mxu0
    %v218 = vadd.f32 %v129, %v217
    %v219 = vpop.f32.mrf.mxu0
    %v220 = vadd.f32 %v129, %v219
    %221 = vmatmul.bf16.gmra.mxu0 %v149
    %v222 = vpop.f32.mrf.mxu0
    %v223 = vadd.f32 %v129, %v222
    %v224 = vpop.f32.mrf.mxu0
    %v225 = vadd.f32 %v129, %v224
    %226 = vmatmul.bf16.gmra.mxu0 %v150
    %v227 = vpop.f32.mrf.mxu0
    %v228 = vadd.f32 %v129, %v227
    %v229 = vpop.f32.mrf.mxu0
    %v230 = vadd.f32 %v129, %v229
    %231 = vdwg.mxu0
    %232 = vmatpush.msra.mxu0 %v102
    %233 = vmatpush.msra.mxu0 %v101
    %234 = vmatpush.msra.mxu0 %v100
    %235 = vmatpush.msra.mxu0 %v99
    %236 = vmatpush.msra.mxu0 %v98
    %237 = vmatpush.msra.mxu0 %v97
    %238 = vmatpush.msra.mxu0 %v96
    %239 = vmatpush.msra.mxu0 %v95
    %240 = vmatpush.msra.mxu0 %v94
    %241 = vmatpush.msra.mxu0 %v93
    %242 = vmatpush.msra.mxu0 %v92
    %243 = vmatpush.msra.mxu0 %v91
    %244 = vmatpush.msra.mxu0 %v90
    %245 = vmatpush.msra.mxu0 %v89
    %246 = vmatpush.msra.mxu0 %v88
    %247 = vmatpush.msra.mxu0 %v87
    %248 = vmatmul.f32.gmra.mxu0 0.0
    %v249 = vpop.f32.mrf.mxu0
    %v250 = vadd.f32 0.0, %v249
    %251 = vdwg.mxu0
    %v252 = vadd.f32 %v213, %v250
    %v253 = vtanh.pop %v252
    %254 = vmatpush.msra.mxu0 %v102
    %255 = vmatpush.msra.mxu0 %v101
    %256 = vmatpush.msra.mxu0 %v100
    %257 = vmatpush.msra.mxu0 %v99
    %258 = vmatpush.msra.mxu0 %v98
    %259 = vmatpush.msra.mxu0 %v97
    %260 = vmatpush.msra.mxu0 %v96
    %261 = vmatpush.msra.mxu0 %v95
    %262 = vmatpush.msra.mxu0 %v94
    %263 = vmatpush.msra.mxu0 %v93
    %264 = vmatpush.msra.mxu0 %v92
    %265 = vmatpush.msra.mxu0 %v91
    %266 = vmatpush.msra.mxu0 %v90
    %267 = vmatpush.msra.mxu0 %v89
    %268 = vmatpush.msra.mxu0 %v88
    %269 = vmatpush.msra.mxu0 %v87
    %270 = vmatmul.f32.gmra.mxu0 %v253
    %v271 = vpop.f32.mrf.mxu0
    %v272 = vadd.f32 0.0, %v271
    %273 = vdwg.mxu0
    %v274 = vadd.f32 %v215, %v272
    %v275 = vtanh.pop %v274
    %276 = vmatpush.msra.mxu0 %v102
    %277 = vmatpush.msra.mxu0 %v101
    %278 = vmatpush.msra.mxu0 %v100
    %279 = vmatpush.msra.mxu0 %v99
    %280 = vmatpush.msra.mxu0 %v98
    %281 = vmatpush.msra.mxu0 %v97
    %282 = vmatpush.msra.mxu0 %v96
    %283 = vmatpush.msra.mxu0 %v95
    %284 = vmatpush.msra.mxu0 %v94
    %285 = vmatpush.msra.mxu0 %v93
    %286 = vmatpush.msra.mxu0 %v92
    %287 = vmatpush.msra.mxu0 %v91
    %288 = vmatpush.msra.mxu0 %v90
    %289 = vmatpush.msra.mxu0 %v89
    %290 = vmatpush.msra.mxu0 %v88
    %291 = vmatpush.msra.mxu0 %v87
    %292 = vmatmul.f32.gmra.mxu0 %v275
    %v293 = vpop.f32.mrf.mxu0
    %v294 = vadd.f32 0.0, %v293
    %295 = vdwg.mxu0
    %v296 = vadd.f32 %v218, %v294
    %v297 = vtanh.pop %v296
    %298 = vmatpush.msra.mxu0 %v102
    %299 = vmatpush.msra.mxu0 %v101
    %300 = vmatpush.msra.mxu0 %v100
    %301 = vmatpush.msra.mxu0 %v99
    %302 = vmatpush.msra.mxu0 %v98
    %303 = vmatpush.msra.mxu0 %v97
    %304 = vmatpush.msra.mxu0 %v96
    %305 = vmatpush.msra.mxu0 %v95
    %306 = vmatpush.msra.mxu0 %v94
    %307 = vmatpush.msra.mxu0 %v93
    %308 = vmatpush.msra.mxu0 %v92
    %309 = vmatpush.msra.mxu0 %v91
    %310 = vmatpush.msra.mxu0 %v90
    %311 = vmatpush.msra.mxu0 %v89
    %312 = vmatpush.msra.mxu0 %v88
    %313 = vmatpush.msra.mxu0 %v87
    %314 = vmatmul.f32.gmra.mxu0 %v297
    %v315 = vpop.f32.mrf.mxu0
    %v316 = vadd.f32 0.0, %v315
    %317 = vdwg.mxu0
    %v318 = vadd.f32 %v220, %v316
    %v319 = vtanh.pop %v318
    %320 = vmatpush.msra.mxu0 %v102
    %321 = vmatpush.msra.mxu0 %v101
    %322 = vmatpush.msra.mxu0 %v100
    %323 = vmatpush.msra.mxu0 %v99
    %324 = vmatpush.msra.mxu0 %v98
    %325 = vmatpush.msra.mxu0 %v97
    %326 = vmatpush.msra.mxu0 %v96
    %327 = vmatpush.msra.mxu0 %v95
    %328 = vmatpush.msra.mxu0 %v94
    %329 = vmatpush.msra.mxu0 %v93
    %330 = vmatpush.msra.mxu0 %v92
    %331 = vmatpush.msra.mxu0 %v91
    %332 = vmatpush.msra.mxu0 %v90
    %333 = vmatpush.msra.mxu0 %v89
    %334 = vmatpush.msra.mxu0 %v88
    %335 = vmatpush.msra.mxu0 %v87
    %336 = vmatmul.f32.gmra.mxu0 %v319
    %v337 = vpop.f32.mrf.mxu0
    %v338 = vadd.f32 0.0, %v337
    %339 = vdwg.mxu0
    %v340 = vadd.f32 %v223, %v338
    %v341 = vtanh.pop %v340
    %342 = vmatpush.msra.mxu0 %v102
    %343 = vmatpush.msra.mxu0 %v101
    %344 = vmatpush.msra.mxu0 %v100
    %345 = vmatpush.msra.mxu0 %v99
    %346 = vmatpush.msra.mxu0 %v98
    %347 = vmatpush.msra.mxu0 %v97
    %348 = vmatpush.msra.mxu0 %v96
    %349 = vmatpush.msra.mxu0 %v95
    %350 = vmatpush.msra.mxu0 %v94
    %351 = vmatpush.msra.mxu0 %v93
    %352 = vmatpush.msra.mxu0 %v92
    %353 = vmatpush.msra.mxu0 %v91
    %354 = vmatpush.msra.mxu0 %v90
    %355 = vmatpush.msra.mxu0 %v89
    %356 = vmatpush.msra.mxu0 %v88
    %357 = vmatpush.msra.mxu0 %v87
    %358 = vmatmul.f32.gmra.mxu0 %v341
    %v359 = vpop.f32.mrf.mxu0
    %v360 = vadd.f32 0.0, %v359
    %361 = vdwg.mxu0
    %v362 = vadd.f32 %v225, %v360
    %v363 = vtanh.pop %v362
    %364 = vmatpush.msra.mxu0 %v102
    %365 = vmatpush.msra.mxu0 %v101
    %366 = vmatpush.msra.mxu0 %v100
    %367 = vmatpush.msra.mxu0 %v99
    %368 = vmatpush.msra.mxu0 %v98
    %369 = vmatpush.msra.mxu0 %v97
    %370 = vmatpush.msra.mxu0 %v96
    %371 = vmatpush.msra.mxu0 %v95
    %372 = vmatpush.msra.mxu0 %v94
    %373 = vmatpush.msra.mxu0 %v93
    %374 = vmatpush.msra.mxu0 %v92
    %375 = vmatpush.msra.mxu0 %v91
    %376 = vmatpush.msra.mxu0 %v90
    %377 = vmatpush.msra.mxu0 %v89
    %378 = vmatpush.msra.mxu0 %v88
    %379 = vmatpush.msra.mxu0 %v87
    %380 = vmatmul.f32.gmra.mxu0 %v363
    %v381 = vpop.f32.mrf.mxu0
    %v382 = vadd.f32 0.0, %v381
    %383 = vdwg.mxu0
    %v384 = vadd.f32 %v228, %v382
    %v385 = vtanh.pop %v384
    %386 = vmatpush.msra.mxu0 %v102
    %387 = vmatpush.msra.mxu0 %v101
    %388 = vmatpush.msra.mxu0 %v100
    %389 = vmatpush.msra.mxu0 %v99
    %390 = vmatpush.msra.mxu0 %v98
    %391 = vmatpush.msra.mxu0 %v97
    %392 = vmatpush.msra.mxu0 %v96
    %393 = vmatpush.msra.mxu0 %v95
    %394 = vmatpush.msra.mxu0 %v94
    %395 = vmatpush.msra.mxu0 %v93
    %396 = vmatpush.msra.mxu0 %v92
    %397 = vmatpush.msra.mxu0 %v91
    %398 = vmatpush.msra.mxu0 %v90
    %399 = vmatpush.msra.mxu0 %v89
    %400 = vmatpush.msra.mxu0 %v88
    %401 = vmatpush.msra.mxu0 %v87
    %402 = vmatmul.f32.gmra.mxu0 %v385
    %v403 = vpop.f32.mrf.mxu0
    %v404 = vadd.f32 0.0, %v403
    %405 = vdwg.mxu0
    %v406 = vadd.f32 %v230, %v404
    %v407 = vtanh.pop %v406
    %v408 = vld [vmem:[#allocation8] sm:$0xff]
    %v409 = vld [vmem:[#allocation8 + $0x8] sm:$0xff]
    %v410 = vld [vmem:[#allocation8 + $0x10] sm:$0xff]
    %v411 = vld [vmem:[#allocation8 + $0x18] sm:$0xff]
    %v412 = vld [vmem:[#allocation8 + $0x20] sm:$0xff]
    %v413 = vld [vmem:[#allocation8 + $0x28] sm:$0xff]
    %v414 = vld [vmem:[#allocation8 + $0x30] sm:$0xff]
    %v415 = vld [vmem:[#allocation8 + $0x38] sm:$0xff]
    %v416 = vld [vmem:[#allocation8 + $0x40] sm:$0xff]
    %v417 = vld [vmem:[#allocation8 + $0x48] sm:$0xff]
    %v418 = vld [vmem:[#allocation8 + $0x50] sm:$0xff]
    %v419 = vld [vmem:[#allocation8 + $0x58] sm:$0xff]
    %v420 = vld [vmem:[#allocation8 + $0x60] sm:$0xff]
    %v421 = vld [vmem:[#allocation8 + $0x68] sm:$0xff]
    %v422 = vld [vmem:[#allocation8 + $0x70] sm:$0xff]
    %v423 = vld [vmem:[#allocation8 + $0x78] sm:$0xff]
    %v424 = vld [vmem:[%s5] sm:$0x1]
    %v426 = vperm.slane %v424, 0
    %428 = vmatpush.msra.mxu0 %v423
    %429 = vmatpush.msra.mxu0 %v422
    %430 = vmatpush.msra.mxu0 %v421
    %431 = vmatpush.msra.mxu0 %v420
    %432 = vmatpush.msra.mxu0 %v419
    %433 = vmatpush.msra.mxu0 %v418
    %434 = vmatpush.msra.mxu0 %v417
    %435 = vmatpush.msra.mxu0 %v416
    %436 = vmatpush.msra.mxu0 %v415
    %437 = vmatpush.msra.mxu0 %v414
    %438 = vmatpush.msra.mxu0 %v413
    %439 = vmatpush.msra.mxu0 %v412
    %440 = vmatpush.msra.mxu0 %v411
    %441 = vmatpush.msra.mxu0 %v410
    %442 = vmatpush.msra.mxu0 %v409
    %443 = vmatpush.msra.mxu0 %v408
    %444 = vmatmul.f32.gmra.mxu0 %v407
    %v445 = vpop.f32.mrf.mxu0
    %v446 = vadd.f32 %v426, %v445
    %447 = vdwg.mxu0
    %448 = vst [vmem:[#allocation10] sm:$0xff] %v446
    // Predicated region
    $region42: #{tpu_custom_call.1} parent=1 // pred_check
      _
    $region43: #{tpu_custom_call.1} parent=1 // pred_check_branch
      %450 = sbr.rel (0) target = $region45
    $region44: #{tpu_custom_call.1} parent=1 // pred_region
      %452 = vsyncadd [#allocation4], 0
      %s454 = sshll.u32 [#allocation10], 4
      %s455 = int_to_ptr.vmem [resolvable:$true] %s454
      %s456 = sshll.u32 %s6, 4
      %s457 = int_to_ptr.hbm [resolvable:$true] %s456
      %459 = dma.vmem_to_hbm [thread:$0]  %s455, 128, %s457, [#allocation4]
    $region45: #{tpu_custom_call.1} parent=1 // pred_fallthru
      _
    // Predicated region
    $region46: #{tpu_custom_call.1} parent=1 // pred_check
      _
    $region47: #{tpu_custom_call.1} parent=1 // pred_check_branch
      %461 = sbr.rel (0) target = $region49
    $region48: #{tpu_custom_call.1} parent=1 // pred_region
      %463 = dma.done [#allocation4], 128
    $region49: #{tpu_custom_call.1} parent=1 // pred_fallthru
      _
    %464 = vsyncpa [#allocation3], 1
    %465 = vsyncpa [#allocation6], 1
    %466 = vsyncpa [#allocation9], 1
    %467 = vsyncpa [#allocation4], 1

</llo_original>
